<compile_context>
chip_gen: v6e
topology: v6e:2x2x1
jax: 0.10.0
libtpu: 0.0.40
codegen_flags: <defaults>
</compile_context>

<pallas_src>
import jax
import jax.numpy as jnp
from jax.experimental import pallas as pl
from jax.experimental.pallas import tpu as pltpu


def _leaky_relu(x, slope=0.2):
    return jnp.where(x > 0, x, slope * x)


def _mapping_kernel(z_ref,
                    w1_ref, b1_ref,
                    w2_ref, b2_ref,
                    w3_ref, b3_ref,
                    w4_ref, b4_ref,
                    y_ref):
    # z_ref : (TILE_B, Zd)     w_i : (in_i, out_i)     b_i : (1, out_i) f32
    # y_ref : (TILE_B, out_dim)  -- single lane-dense output slab
    h = jnp.dot(z_ref[...], w1_ref[...], preferred_element_type=jnp.float32)
    h = _leaky_relu(h + b1_ref[...])

    h = jnp.dot(h.astype(w2_ref.dtype), w2_ref[...],
                preferred_element_type=jnp.float32)
    h = _leaky_relu(h + b2_ref[...])

    h = jnp.dot(h.astype(w3_ref.dtype), w3_ref[...],
                preferred_element_type=jnp.float32)
    h = _leaky_relu(h + b3_ref[...])

    y = jnp.dot(h.astype(w4_ref.dtype), w4_ref[...],
                preferred_element_type=jnp.float32)
    y_ref[...] = (y + b4_ref[...]).astype(y_ref.dtype)


def mapping_network_forward(z, params, *, tile_b=256, compute_dtype=None):
    """Fused forward pass.  z: (..., z_dim) -> (frequencies, phase_shifts)."""
    (w1, b1), (w2, b2), (w3, b3), (w4, b4) = (
        params["fc1"], params["fc2"], params["fc3"], params["fc4"]
    )
    z_dim, hidden = w1.shape
    out_dim = w4.shape[-1]
    assert out_dim % 2 == 0
    half = out_dim // 2
    out_dtype = z.dtype

    lead = z.shape[:-1]
    z2 = z.reshape(-1, z_dim)
    B = z2.shape[0]

    # Optional MXU-input dtype (e.g. jnp.bfloat16 on v6e/v7x). Accumulation stays f32.
    if compute_dtype is not None:
        z2 = z2.astype(compute_dtype)
        w1, w2, w3, w4 = (a.astype(compute_dtype) for a in (w1, w2, w3, w4))
    # Biases stay f32: the bias-add / LeakyReLU epilogue runs in f32 regardless.
    b1r, b2r, b3r, b4r = (b.astype(jnp.float32).reshape(1, -1)
                          for b in (b1, b2, b3, b4))

    # ---- batch tiling: multiple of 8 sublanes, big enough to feed the MXU M axis ----
    tile_b = int(max(8, min(tile_b, pl.cdiv(B, 8) * 8)))
    b_pad = pl.cdiv(B, tile_b) * tile_b
    if b_pad != B:
        z2 = jnp.pad(z2, ((0, b_pad - B), (0, 0)))
    grid = (b_pad // tile_b,)

    row_map = lambda i: (i, 0)       # z / y tiles march over batch
    const_map = lambda i: (0, 0)     # weights & biases stay VMEM-resident

    in_specs = [
        pl.BlockSpec((tile_b, z_dim), row_map),
        pl.BlockSpec(w1.shape, const_map), pl.BlockSpec((1, hidden), const_map),
        pl.BlockSpec(w2.shape, const_map), pl.BlockSpec((1, hidden), const_map),
        pl.BlockSpec(w3.shape, const_map), pl.BlockSpec((1, hidden), const_map),
        pl.BlockSpec(w4.shape, const_map), pl.BlockSpec((1, out_dim), const_map),
    ]
    out_spec = pl.BlockSpec((tile_b, out_dim), row_map)

    # ---- scheduler hint ----
    flops = 2 * b_pad * (z_dim * hidden + 2 * hidden * hidden + hidden * out_dim)
    weight_bytes = sum(int(a.size) * a.dtype.itemsize
                       for a in (w1, b1r, w2, b2r, w3, b3r, w4, b4r))
    io_bytes = b_pad * (z_dim * z2.dtype.itemsize + out_dim * jnp.dtype(out_dtype).itemsize)
    cost = pl.CostEstimate(flops=int(flops), transcendentals=0,
                           bytes_accessed=int(io_bytes + weight_bytes))

    # ---- VMEM budget: resident weights + double-buffered z/y tiles, with headroom.
    # Keep well under v7x's 64 MiB physical VMEM.
    tile_bytes = tile_b * (z_dim * z2.dtype.itemsize
                           + out_dim * jnp.dtype(out_dtype).itemsize)
    vmem_limit = int(min(48 * 1024 * 1024,
                         max(16 * 1024 * 1024,
                             4 * (weight_bytes + 2 * tile_bytes + tile_b * hidden * 4))))

    y = pl.pallas_call(
        _mapping_kernel,
        out_shape=jax.ShapeDtypeStruct((b_pad, out_dim), out_dtype),
        grid=grid,
        in_specs=in_specs,
        out_specs=out_spec,
        compiler_params=pltpu.CompilerParams(
            dimension_semantics=("parallel",),   # batch tiles independent -> both TCs on v7x
            vmem_limit_bytes=vmem_limit),
        cost_estimate=cost,
    )(z2, w1, b1r, w2, b2r, w3, b3r, w4, b4r)

    y = y[:B]
    frequencies = y[:, :half].reshape(*lead, half)
    phase_shifts = y[:, half:].reshape(*lead, half)
    return frequencies, phase_shifts


def init_params(key, z_dim, map_hidden_dim, map_output_dim):
    """Mimics the PyTorch module's init (kaiming_normal leaky_relu a=0.2 fan_in on
    weights, default uniform bias init, last-layer weight scaled by 0.25)."""
    def linear_params(k, fan_in, fan_out, scale=1.0):
        kw, kb = jax.random.split(k)
        gain = (2.0 / (1.0 + 0.2 ** 2)) ** 0.5
        std = gain / (fan_in ** 0.5)
        w = std * jax.random.normal(kw, (fan_in, fan_out), jnp.float32)
        bound = 1.0 / (fan_in ** 0.5)
        b = jax.random.uniform(kb, (fan_out,), jnp.float32, -bound, bound)
        return w * scale, b

    k1, k2, k3, k4 = jax.random.split(key, 4)
    return {
        "fc1": linear_params(k1, z_dim, map_hidden_dim),
        "fc2": linear_params(k2, map_hidden_dim, map_hidden_dim),
        "fc3": linear_params(k3, map_hidden_dim, map_hidden_dim),
        "fc4": linear_params(k4, map_hidden_dim, map_output_dim, scale=0.25),
    }


def _reference_forward(z, params):
    """Plain-JAX reference matching the PyTorch module."""
    h = z
    for name in ("fc1", "fc2", "fc3"):
        w, b = params[name]
        h = jnp.dot(h, w) + b
        h = jnp.where(h > 0, h, 0.2 * h)
    w, b = params["fc4"]
    y = jnp.dot(h, w) + b
    half = y.shape[-1] // 2
    return y[..., :half], y[..., half:]


if __name__ == "__main__":
    key = jax.random.PRNGKey(0)
    kz, kp = jax.random.split(key)

    Z_DIM, HIDDEN, OUT = 32, 64, 64
    z = jax.random.normal(kz, (2, 8, Z_DIM), jnp.float32)   # (..., z_dim) like PyTorch
    params = init_params(kp, Z_DIM, HIDDEN, OUT)

    freq, phase = jax.block_until_ready(mapping_network_forward(z, params))
    assert freq.shape == (2, 8, OUT // 2), freq.shape
    assert phase.shape == (2, 8, OUT // 2), phase.shape

    ref_freq, ref_phase = jax.block_until_ready(_reference_forward(z, params))
    assert jnp.allclose(freq, ref_freq, atol=1e-4, rtol=1e-4), float(
        jnp.max(jnp.abs(freq - ref_freq)))
    assert jnp.allclose(phase, ref_phase, atol=1e-4, rtol=1e-4), float(
        jnp.max(jnp.abs(phase - ref_phase)))

    # Exercise a batch that is not a multiple of the tile (padding path) too.
    z_big = jax.random.normal(kz, (37, Z_DIM), jnp.float32)
    f2, p2 = jax.block_until_ready(mapping_network_forward(z_big, params, tile_b=16))
    rf2, rp2 = _reference_forward(z_big, params)
    assert jnp.allclose(f2, rf2, atol=1e-4, rtol=1e-4)
    assert jnp.allclose(p2, rp2, atol=1e-4, rtol=1e-4)

    print("KERNEL_OK")
</pallas_src>

<mosaic_0001>
module attributes {stable_mosaic.version = 11 : i64} {
  func.func @_mapping_kernel(%arg0: i32, %arg1: memref<16x32xf32, #tpu.memory_space<vmem>>, %arg2: memref<32x64xf32, #tpu.memory_space<vmem>>, %arg3: memref<1x64xf32, #tpu.memory_space<vmem>>, %arg4: memref<64x64xf32, #tpu.memory_space<vmem>>, %arg5: memref<1x64xf32, #tpu.memory_space<vmem>>, %arg6: memref<64x64xf32, #tpu.memory_space<vmem>>, %arg7: memref<1x64xf32, #tpu.memory_space<vmem>>, %arg8: memref<64x64xf32, #tpu.memory_space<vmem>>, %arg9: memref<1x64xf32, #tpu.memory_space<vmem>>, %arg10: memref<16x64xf32, #tpu.memory_space<vmem>>) attributes {dimension_semantics = [#tpu.dimension_semantics<parallel>], iteration_bounds = array<i64: 1>, scalar_prefetch = 0 : i64, scratch_operands = 0 : i64, tpu.core_type = #tpu.core_type<tc>, window_params = [{transform_indices = @transform_0, window_bounds = array<i64: 16, 32>}, {pipeline_mode = #tpu.pipeline_mode<synchronous>, transform_indices = @transform_1, window_bounds = array<i64: 32, 64>}, {pipeline_mode = #tpu.pipeline_mode<synchronous>, transform_indices = @transform_2, window_bounds = array<i64: 1, 64>}, {pipeline_mode = #tpu.pipeline_mode<synchronous>, transform_indices = @transform_3, window_bounds = array<i64: 64, 64>}, {pipeline_mode = #tpu.pipeline_mode<synchronous>, transform_indices = @transform_4, window_bounds = array<i64: 1, 64>}, {pipeline_mode = #tpu.pipeline_mode<synchronous>, transform_indices = @transform_5, window_bounds = array<i64: 64, 64>}, {pipeline_mode = #tpu.pipeline_mode<synchronous>, transform_indices = @transform_6, window_bounds = array<i64: 1, 64>}, {pipeline_mode = #tpu.pipeline_mode<synchronous>, transform_indices = @transform_7, window_bounds = array<i64: 64, 64>}, {pipeline_mode = #tpu.pipeline_mode<synchronous>, transform_indices = @transform_8, window_bounds = array<i64: 1, 64>}, {transform_indices = @transform_9, window_bounds = array<i64: 16, 64>}]} {
    %c0 = arith.constant 0 : index
    %c0_0 = arith.constant 0 : index
    %0 = vector.load %arg1[%c0, %c0_0] : memref<16x32xf32, #tpu.memory_space<vmem>>, vector<16x32xf32>
    %c0_1 = arith.constant 0 : index
    %c0_2 = arith.constant 0 : index
    %1 = vector.load %arg2[%c0_1, %c0_2] : memref<32x64xf32, #tpu.memory_space<vmem>>, vector<32x64xf32>
    %cst = arith.constant dense<0.000000e+00> : vector<16x64xf32>
    %2 = tpu.matmul %0, %1, %cst {dimension_numbers = #tpu.dot_dimension_numbers<[1], [0], [0], [1], [0, 0, 1, 1], [], []>} : vector<16x32xf32>, vector<32x64xf32>, vector<16x64xf32> -> vector<16x64xf32>
    %c0_3 = arith.constant 0 : index
    %c0_4 = arith.constant 0 : index
    %3 = vector.load %arg3[%c0_3, %c0_4] : memref<1x64xf32, #tpu.memory_space<vmem>>, vector<1x64xf32>
    %4 = vector.broadcast %3 : vector<1x64xf32> to vector<16x64xf32>
    %5 = arith.addf %2, %4 : vector<16x64xf32>
    %cst_5 = arith.constant 0.000000e+00 : f32
    %6 = vector.broadcast %cst_5 : f32 to vector<16x64xf32>
    %7 = arith.cmpf ogt, %5, %6 : vector<16x64xf32>
    %cst_6 = arith.constant 2.000000e-01 : f32
    %8 = vector.broadcast %cst_6 : f32 to vector<16x64xf32>
    %9 = arith.mulf %8, %5 : vector<16x64xf32>
    %10 = arith.select %7, %5, %9 : vector<16x64xi1>, vector<16x64xf32>
    %c0_7 = arith.constant 0 : index
    %c0_8 = arith.constant 0 : index
    %11 = vector.load %arg4[%c0_7, %c0_8] : memref<64x64xf32, #tpu.memory_space<vmem>>, vector<64x64xf32>
    %cst_9 = arith.constant dense<0.000000e+00> : vector<16x64xf32>
    %12 = tpu.matmul %10, %11, %cst_9 {dimension_numbers = #tpu.dot_dimension_numbers<[1], [0], [0], [1], [0, 0, 1, 1], [], []>} : vector<16x64xf32>, vector<64x64xf32>, vector<16x64xf32> -> vector<16x64xf32>
    %c0_10 = arith.constant 0 : index
    %c0_11 = arith.constant 0 : index
    %13 = vector.load %arg5[%c0_10, %c0_11] : memref<1x64xf32, #tpu.memory_space<vmem>>, vector<1x64xf32>
    %14 = vector.broadcast %13 : vector<1x64xf32> to vector<16x64xf32>
    %15 = arith.addf %12, %14 : vector<16x64xf32>
    %cst_12 = arith.constant 0.000000e+00 : f32
    %16 = vector.broadcast %cst_12 : f32 to vector<16x64xf32>
    %17 = arith.cmpf ogt, %15, %16 : vector<16x64xf32>
    %cst_13 = arith.constant 2.000000e-01 : f32
    %18 = vector.broadcast %cst_13 : f32 to vector<16x64xf32>
    %19 = arith.mulf %18, %15 : vector<16x64xf32>
    %20 = arith.select %17, %15, %19 : vector<16x64xi1>, vector<16x64xf32>
    %c0_14 = arith.constant 0 : index
    %c0_15 = arith.constant 0 : index
    %21 = vector.load %arg6[%c0_14, %c0_15] : memref<64x64xf32, #tpu.memory_space<vmem>>, vector<64x64xf32>
    %cst_16 = arith.constant dense<0.000000e+00> : vector<16x64xf32>
    %22 = tpu.matmul %20, %21, %cst_16 {dimension_numbers = #tpu.dot_dimension_numbers<[1], [0], [0], [1], [0, 0, 1, 1], [], []>} : vector<16x64xf32>, vector<64x64xf32>, vector<16x64xf32> -> vector<16x64xf32>
    %c0_17 = arith.constant 0 : index
    %c0_18 = arith.constant 0 : index
    %23 = vector.load %arg7[%c0_17, %c0_18] : memref<1x64xf32, #tpu.memory_space<vmem>>, vector<1x64xf32>
    %24 = vector.broadcast %23 : vector<1x64xf32> to vector<16x64xf32>
    %25 = arith.addf %22, %24 : vector<16x64xf32>
    %cst_19 = arith.constant 0.000000e+00 : f32
    %26 = vector.broadcast %cst_19 : f32 to vector<16x64xf32>
    %27 = arith.cmpf ogt, %25, %26 : vector<16x64xf32>
    %cst_20 = arith.constant 2.000000e-01 : f32
    %28 = vector.broadcast %cst_20 : f32 to vector<16x64xf32>
    %29 = arith.mulf %28, %25 : vector<16x64xf32>
    %30 = arith.select %27, %25, %29 : vector<16x64xi1>, vector<16x64xf32>
    %c0_21 = arith.constant 0 : index
    %c0_22 = arith.constant 0 : index
    %31 = vector.load %arg8[%c0_21, %c0_22] : memref<64x64xf32, #tpu.memory_space<vmem>>, vector<64x64xf32>
    %cst_23 = arith.constant dense<0.000000e+00> : vector<16x64xf32>
    %32 = tpu.matmul %30, %31, %cst_23 {dimension_numbers = #tpu.dot_dimension_numbers<[1], [0], [0], [1], [0, 0, 1, 1], [], []>} : vector<16x64xf32>, vector<64x64xf32>, vector<16x64xf32> -> vector<16x64xf32>
    %c0_24 = arith.constant 0 : index
    %c0_25 = arith.constant 0 : index
    %33 = vector.load %arg9[%c0_24, %c0_25] : memref<1x64xf32, #tpu.memory_space<vmem>>, vector<1x64xf32>
    %34 = vector.broadcast %33 : vector<1x64xf32> to vector<16x64xf32>
    %35 = arith.addf %32, %34 : vector<16x64xf32>
    %c0_26 = arith.constant 0 : index
    %c0_27 = arith.constant 0 : index
    %36 = vector.load %arg10[%c0_26, %c0_27] : memref<16x64xf32, #tpu.memory_space<vmem>>, vector<16x64xf32>
    tpu.vector_store %arg10[%c0_26, %c0_27], %35 {strides = array<i32>} : memref<16x64xf32, #tpu.memory_space<vmem>>, vector<16x64xf32>,
    return
  }
  func.func @transform_0(%arg0: i32) -> (i32, i32) {
    %c0_i32 = arith.constant 0 : i32
    %c0_i32_0 = arith.constant 0 : i32
    return %arg0, %c0_i32 : i32, i32
  }
  func.func @transform_1(%arg0: i32) -> (i32, i32) {
    %c0_i32 = arith.constant 0 : i32
    %c0_i32_0 = arith.constant 0 : i32
    %c0_i32_1 = arith.constant 0 : i32
    return %c0_i32, %c0_i32_0 : i32, i32
  }
  func.func @transform_2(%arg0: i32) -> (i32, i32) {
    %c0_i32 = arith.constant 0 : i32
    %c0_i32_0 = arith.constant 0 : i32
    %c0_i32_1 = arith.constant 0 : i32
    return %c0_i32, %c0_i32_0 : i32, i32
  }
  func.func @transform_3(%arg0: i32) -> (i32, i32) {
    %c0_i32 = arith.constant 0 : i32
    %c0_i32_0 = arith.constant 0 : i32
    %c0_i32_1 = arith.constant 0 : i32
    return %c0_i32, %c0_i32_0 : i32, i32
  }
  func.func @transform_4(%arg0: i32) -> (i32, i32) {
    %c0_i32 = arith.constant 0 : i32
    %c0_i32_0 = arith.constant 0 : i32
    %c0_i32_1 = arith.constant 0 : i32
    return %c0_i32, %c0_i32_0 : i32, i32
  }
  func.func @transform_5(%arg0: i32) -> (i32, i32) {
    %c0_i32 = arith.constant 0 : i32
    %c0_i32_0 = arith.constant 0 : i32
    %c0_i32_1 = arith.constant 0 : i32
    return %c0_i32, %c0_i32_0 : i32, i32
  }
  func.func @transform_6(%arg0: i32) -> (i32, i32) {
    %c0_i32 = arith.constant 0 : i32
    %c0_i32_0 = arith.constant 0 : i32
    %c0_i32_1 = arith.constant 0 : i32
    return %c0_i32, %c0_i32_0 : i32, i32
  }
  func.func @transform_7(%arg0: i32) -> (i32, i32) {
    %c0_i32 = arith.constant 0 : i32
    %c0_i32_0 = arith.constant 0 : i32
    %c0_i32_1 = arith.constant 0 : i32
    return %c0_i32, %c0_i32_0 : i32, i32
  }
  func.func @transform_8(%arg0: i32) -> (i32, i32) {
    %c0_i32 = arith.constant 0 : i32
    %c0_i32_0 = arith.constant 0 : i32
    %c0_i32_1 = arith.constant 0 : i32
    return %c0_i32, %c0_i32_0 : i32, i32
  }
  func.func @transform_9(%arg0: i32) -> (i32, i32) {
    %c0_i32 = arith.constant 0 : i32
    %c0_i32_0 = arith.constant 0 : i32
    return %arg0, %c0_i32 : i32, i32
  }
}

</mosaic_0001>

<llo_original>
// kernel: tpu_custom_call.1
$region0: #{tpu_custom_call.1}
  #allocation0 [shape = 'u32[]', space=smem, size = 0x4, offset = 0x4, fixed_abs, tag = 'smem constant byte address 0x4 - core index']
  #allocation1 [shape = 'u32[144,128]{1,0:T(1,128)}', space=vmem, size = 0x12000, scoped, tag = 'internal scratch']
  %s0 = inlined_call_operand.hbm [shape: f32[16,32], index: 0, kind: input, shape index: {}]
  %s1 = inlined_call_operand.hbm [shape: f32[32,64], index: 1, kind: input, shape index: {}]
  %s2 = inlined_call_operand.vmem [shape: f32[1,64], index: 2, kind: input, shape index: {}]
  %s3 = inlined_call_operand.hbm [shape: f32[64,64], index: 3, kind: input, shape index: {}]
  %s4 = inlined_call_operand.vmem [shape: f32[1,64], index: 4, kind: input, shape index: {}]
  %s5 = inlined_call_operand.hbm [shape: f32[64,64], index: 5, kind: input, shape index: {}]
  %s6 = inlined_call_operand.vmem [shape: f32[1,64], index: 6, kind: input, shape index: {}]
  %s7 = inlined_call_operand.hbm [shape: f32[64,64], index: 7, kind: input, shape index: {}]
  %s8 = inlined_call_operand.vmem [shape: f32[1,64], index: 8, kind: input, shape index: {}]
  %s9 = inlined_call_operand.hbm [shape: f32[16,64], index: 9, kind: output, shape index: {}]
  %s10 = sld [smem:[#allocation0]]
  $region66: #{tpu_custom_call.1} parent=0
    _
  %s12 = ssub.s32 1, %s10
  %s13 = scalar_select 0, %s12, %s10
  $region1: #{tpu_custom_call.1} parent=0
    #allocation2 [shape = 'u8[8192]{0}', space=vmem, size = 0x2000, scoped, tag = 'input window, operand 0, single buffered']
    #allocation3 [shape = 's32[1]{0}', space=sflag, size = 0x4, scoped, tag = 'scoped memory for tpu_custom_call.1']
    #allocation4 [shape = 's32[1]{0}', space=sflag, size = 0x4, scoped, tag = 'scoped memory for tpu_custom_call.1']
    #allocation5 [shape = 'u8[16384]{0}', space=vmem, size = 0x4000, scoped, tag = 'input window, operand 1, single buffered']
    #allocation6 [shape = 's32[1]{0}', space=sflag, size = 0x4, scoped, tag = 'scoped memory for tpu_custom_call.1']
    #allocation7 [shape = 'u8[32768]{0}', space=vmem, size = 0x8000, scoped, tag = 'input window, operand 3, single buffered']
    #allocation8 [shape = 'u8[32768]{0}', space=vmem, size = 0x8000, scoped, tag = 'input window, operand 5, single buffered']
    #allocation9 [shape = 's32[1]{0}', space=sflag, size = 0x4, scoped, tag = 'scoped memory for tpu_custom_call.1']
    #allocation10 [shape = 'u8[32768]{0}', space=vmem, size = 0x8000, scoped, tag = 'input window, operand 7, single buffered']
    #allocation11 [shape = 'u8[8192]{0}', space=vmem, size = 0x2000, scoped, tag = 'output window, operand 0, single buffered']
    %14 = vsyncpa [#allocation3], 0
    %15 = vsyncpa [#allocation6], 0
    %16 = vsyncpa [#allocation9], 0
    %17 = vsyncpa [#allocation4], 0
    // Predicated region
    $region2: #{tpu_custom_call.1} parent=1 // pred_check
      _
    $region3: #{tpu_custom_call.1} parent=1 // pred_check_branch
      %19 = sbr.rel (0) target = $region5
    $region4: #{tpu_custom_call.1} parent=1 // pred_region
      %s21 = ssub.s32 256, 256
      %22 = vsyncadd [#allocation3], %s21
      %s23 = sshll.u32 [#allocation2], 4
      %s24 = int_to_ptr.vmem [resolvable:$true] %s23
      %29 = dma.hbm_to_vmem [thread:$0]  %s0, 256, %s24, [#allocation3], 128, 128, 8
    $region5: #{tpu_custom_call.1} parent=1 // pred_fallthru
      _
    // Predicated region
    $region6: #{tpu_custom_call.1} parent=1 // pred_check
      _
    $region7: #{tpu_custom_call.1} parent=1 // pred_check_branch
      %31 = sbr.rel (0) target = $region9
    $region8: #{tpu_custom_call.1} parent=1 // pred_region
      %s33 = ssub.s32 512, 512
      %34 = vsyncadd [#allocation6], %s33
      %s35 = sshll.u32 [#allocation5], 4
      %s36 = int_to_ptr.vmem [resolvable:$true] %s35
      %41 = dma.hbm_to_vmem [thread:$0]  %s1, 512, %s36, [#allocation6], 128, 128, 8
    $region9: #{tpu_custom_call.1} parent=1 // pred_fallthru
      _
    // Predicated region
    $region10: #{tpu_custom_call.1} parent=1 // pred_check
      _
    $region11: #{tpu_custom_call.1} parent=1 // pred_check_branch
      %43 = sbr.rel (0) target = $region13
    $region12: #{tpu_custom_call.1} parent=1 // pred_region
      _
    $region13: #{tpu_custom_call.1} parent=1 // pred_fallthru
      _
    // Predicated region
    $region14: #{tpu_custom_call.1} parent=1 // pred_check
      _
    $region15: #{tpu_custom_call.1} parent=1 // pred_check_branch
      %45 = sbr.rel (0) target = $region17
    $region16: #{tpu_custom_call.1} parent=1 // pred_region
      %s47 = ssub.s32 1024, 1024
      %48 = vsyncadd [#allocation6], %s47
      %s49 = sshll.u32 [#allocation7], 4
      %s50 = int_to_ptr.vmem [resolvable:$true] %s49
      %55 = dma.hbm_to_vmem [thread:$0]  %s3, 1024, %s50, [#allocation6], 128, 128, 8
    $region17: #{tpu_custom_call.1} parent=1 // pred_fallthru
      _
    // Predicated region
    $region18: #{tpu_custom_call.1} parent=1 // pred_check
      _
    $region19: #{tpu_custom_call.1} parent=1 // pred_check_branch
      %57 = sbr.rel (0) target = $region21
    $region20: #{tpu_custom_call.1} parent=1 // pred_region
      _
    $region21: #{tpu_custom_call.1} parent=1 // pred_fallthru
      _
    // Predicated region
    $region22: #{tpu_custom_call.1} parent=1 // pred_check
      _
    $region23: #{tpu_custom_call.1} parent=1 // pred_check_branch
      %59 = sbr.rel (0) target = $region25
    $region24: #{tpu_custom_call.1} parent=1 // pred_region
      %s61 = ssub.s32 1024, 1024
      %62 = vsyncadd [#allocation9], %s61
      %s63 = sshll.u32 [#allocation8], 4
      %s64 = int_to_ptr.vmem [resolvable:$true] %s63
      %69 = dma.hbm_to_vmem [thread:$0]  %s5, 1024, %s64, [#allocation9], 128, 128, 8
    $region25: #{tpu_custom_call.1} parent=1 // pred_fallthru
      _
    // Predicated region
    $region26: #{tpu_custom_call.1} parent=1 // pred_check
      _
    $region27: #{tpu_custom_call.1} parent=1 // pred_check_branch
      %71 = sbr.rel (0) target = $region29
    $region28: #{tpu_custom_call.1} parent=1 // pred_region
      _
    $region29: #{tpu_custom_call.1} parent=1 // pred_fallthru
      _
    // Predicated region
    $region30: #{tpu_custom_call.1} parent=1 // pred_check
      _
    $region31: #{tpu_custom_call.1} parent=1 // pred_check_branch
      %73 = sbr.rel (0) target = $region33
    $region32: #{tpu_custom_call.1} parent=1 // pred_region
      %s75 = ssub.s32 1024, 1024
      %76 = vsyncadd [#allocation9], %s75
      %s77 = sshll.u32 [#allocation10], 4
      %s78 = int_to_ptr.vmem [resolvable:$true] %s77
      %83 = dma.hbm_to_vmem [thread:$0]  %s7, 1024, %s78, [#allocation9], 128, 128, 8
    $region33: #{tpu_custom_call.1} parent=1 // pred_fallthru
      _
    // Predicated region
    $region34: #{tpu_custom_call.1} parent=1 // pred_check
      _
    $region35: #{tpu_custom_call.1} parent=1 // pred_check_branch
      %85 = sbr.rel (0) target = $region37
    $region36: #{tpu_custom_call.1} parent=1 // pred_region
      _
    $region37: #{tpu_custom_call.1} parent=1 // pred_fallthru
      _
    // Predicated region
    $region38: #{tpu_custom_call.1} parent=1 // pred_check
      _
    $region39: #{tpu_custom_call.1} parent=1 // pred_check_branch
      %87 = sbr.rel (0) target = $region41
    $region40: #{tpu_custom_call.1} parent=1 // pred_region
      %88 = dma.done [#allocation3], 256
    $region41: #{tpu_custom_call.1} parent=1 // pred_fallthru
      _
    // Predicated region
    $region42: #{tpu_custom_call.1} parent=1 // pred_check
      _
    $region43: #{tpu_custom_call.1} parent=1 // pred_check_branch
      %90 = sbr.rel (0) target = $region45
    $region44: #{tpu_custom_call.1} parent=1 // pred_region
      %91 = dma.done [#allocation6], 512
    $region45: #{tpu_custom_call.1} parent=1 // pred_fallthru
      _
    // Predicated region
    $region46: #{tpu_custom_call.1} parent=1 // pred_check
      _
    $region47: #{tpu_custom_call.1} parent=1 // pred_check_branch
      %93 = sbr.rel (0) target = $region49
    $region48: #{tpu_custom_call.1} parent=1 // pred_region
      %94 = dma.done [#allocation6], 1024
    $region49: #{tpu_custom_call.1} parent=1 // pred_fallthru
      _
    // Predicated region
    $region50: #{tpu_custom_call.1} parent=1 // pred_check
      _
    $region51: #{tpu_custom_call.1} parent=1 // pred_check_branch
      %96 = sbr.rel (0) target = $region53
    $region52: #{tpu_custom_call.1} parent=1 // pred_region
      %97 = dma.done [#allocation9], 1024
    $region53: #{tpu_custom_call.1} parent=1 // pred_fallthru
      _
    // Predicated region
    $region54: #{tpu_custom_call.1} parent=1 // pred_check
      _
    $region55: #{tpu_custom_call.1} parent=1 // pred_check_branch
      %99 = sbr.rel (0) target = $region57
    $region56: #{tpu_custom_call.1} parent=1 // pred_region
      %100 = dma.done [#allocation9], 1024
    $region57: #{tpu_custom_call.1} parent=1 // pred_fallthru
      _
    %v101 = vld [vmem:[#allocation2] sm:$0xff]
    %v102 = vld [vmem:[#allocation2 + $0x8] sm:$0xff]
    %v103 = vld [vmem:[#allocation5] sm:$0xff]
    %v104 = vld [vmem:[#allocation5 + $0x8] sm:$0xff]
    %v105 = vld [vmem:[#allocation5 + $0x10] sm:$0xff]
    %v106 = vld [vmem:[#allocation5 + $0x18] sm:$0xff]
    %v107 = vld [vmem:[%s2] sm:$0x1]
    %v109 = vlaneseq
    %v110 = vshrl.u32 %v109, 7
    %v111 = vsub.s32 0, %v110
    %v112 = vrot.slane %v107, %v111
    %vm114 = vcmask 261120
    %v116 = vsel %vm114, %v101, 0
    %v119 = vsel %vm114, %v102, 0
    %121 = vmatprep.subr.mxu0 0.0
    %122 = vmatpush1.msra.mxu0 0.0
    %123 = vmatprep.subr.mxu0 0.0
    %124 = vmatpush1.msra.mxu0 0.0
    %125 = vmatprep.subr.mxu0 0.0
    %126 = vmatpush1.msra.mxu0 0.0
    %127 = vmatprep.subr.mxu0 0.0
    %128 = vmatpush1.msra.mxu0 0.0
    %129 = vmatprep.subr.mxu0 0.0
    %130 = vmatpush1.msra.mxu0 0.0
    %131 = vmatprep.subr.mxu0 0.0
    %132 = vmatpush1.msra.mxu0 0.0
    %133 = vmatprep.subr.mxu0 0.0
    %134 = vmatpush1.msra.mxu0 0.0
    %135 = vmatprep.subr.mxu0 0.0
    %136 = vmatpush1.msra.mxu0 0.0
    %137 = vmatprep.subr.mxu0 0.0
    %138 = vmatpush1.msra.mxu0 0.0
    %139 = vmatprep.subr.mxu0 0.0
    %140 = vmatpush1.msra.mxu0 0.0
    %141 = vmatprep.subr.mxu0 0.0
    %142 = vmatpush1.msra.mxu0 0.0
    %143 = vmatprep.subr.mxu0 0.0
    %144 = vmatpush1.msra.mxu0 0.0
    %145 = vmatprep.subr.mxu0 0.0
    %146 = vmatpush1.msra.mxu0 %v106
    %147 = vmatprep.subr.mxu0 0.0
    %148 = vmatpush1.msra.mxu0 %v105
    %149 = vmatprep.subr.mxu0 0.0
    %150 = vmatpush1.msra.mxu0 %v104
    %151 = vmatprep.subr.mxu0 0.0
    %152 = vmatpush1.msra.mxu0 %v103
    %153 = vmatprep.subr.mxu0 0.0
    %154 = vmatpush2.msra.mxu0 0.0
    %155 = vmatprep.subr.mxu0 0.0
    %156 = vmatpush2.msra.mxu0 0.0
    %157 = vmatprep.subr.mxu0 0.0
    %158 = vmatpush2.msra.mxu0 0.0
    %159 = vmatprep.subr.mxu0 0.0
    %160 = vmatpush2.msra.mxu0 0.0
    %161 = vmatprep.subr.mxu0 0.0
    %162 = vmatpush2.msra.mxu0 0.0
    %163 = vmatprep.subr.mxu0 0.0
    %164 = vmatpush2.msra.mxu0 0.0
    %165 = vmatprep.subr.mxu0 0.0
    %166 = vmatpush2.msra.mxu0 0.0
    %167 = vmatprep.subr.mxu0 0.0
    %168 = vmatpush2.msra.mxu0 0.0
    %169 = vmatprep.subr.mxu0 0.0
    %170 = vmatpush2.msra.mxu0 0.0
    %171 = vmatprep.subr.mxu0 0.0
    %172 = vmatpush2.msra.mxu0 0.0
    %173 = vmatprep.subr.mxu0 0.0
    %174 = vmatpush2.msra.mxu0 0.0
    %175 = vmatprep.subr.mxu0 0.0
    %176 = vmatpush2.msra.mxu0 0.0
    %177 = vmatprep.subr.mxu0 0.0
    %178 = vmatpush2.msra.mxu0 0.0
    %179 = vmatprep.subr.mxu0 0.0
    %180 = vmatpush2.msra.mxu0 0.0
    %181 = vmatprep.subr.mxu0 0.0
    %182 = vmatpush2.msra.mxu0 0.0
    %183 = vmatprep.subr.mxu0 0.0
    %184 = vmatpush2.msra.mxu0 0.0
    %185 = vmatprep.mubr.f32.mxu0 0.0
    %186 = vmatmul.mubr.f32.gmra.mxu0 %v116
    %v187 = vpop.f32.mrf.mxu0
    %v188 = vadd.f32 %v112, %v187
    %v189 = vpop.f32.mrf.mxu0
    %190 = vmatprep.mubr.f32.mxu0 0.0
    %191 = vmatmul.mubr.f32.gmra.mxu0 %v119
    %v192 = vpop.f32.mrf.mxu0
    %v193 = vadd.f32 %v112, %v192
    %v194 = vpop.f32.mrf.mxu0
    %195 = vdwg.mxu0
    %vm196 = vcmp.gt.f32.partialorder %v188, 0.0
    %vm197 = vcmp.gt.f32.partialorder %v193, 0.0
    %v198 = vmul.f32 %v188, 0.2
    %v199 = vmul.f32 %v193, 0.2
    %v200 = vsel %vm196, %v188, %v198
    %v201 = vsel %vm197, %v193, %v199
    %v202 = vld [vmem:[#allocation7] sm:$0xff]
    %v203 = vld [vmem:[#allocation7 + $0x8] sm:$0xff]
    %v204 = vld [vmem:[#allocation7 + $0x10] sm:$0xff]
    %v205 = vld [vmem:[#allocation7 + $0x18] sm:$0xff]
    %v206 = vld [vmem:[#allocation7 + $0x20] sm:$0xff]
    %v207 = vld [vmem:[#allocation7 + $0x28] sm:$0xff]
    %v208 = vld [vmem:[#allocation7 + $0x30] sm:$0xff]
    %v209 = vld [vmem:[#allocation7 + $0x38] sm:$0xff]
    %v210 = vld [vmem:[%s4] sm:$0x1]
    %v212 = vlaneseq
    %v213 = vshrl.u32 %v212, 7
    %v214 = vsub.s32 0, %v213
    %v215 = vrot.slane %v210, %v214
    %vm217 = vcmask 523264
    %v219 = vsel %vm217, %v200, 0
    %v222 = vsel %vm217, %v201, 0
    %224 = vmatprep.subr.mxu0 0.0
    %225 = vmatpush1.msra.mxu0 0.0
    %226 = vmatprep.subr.mxu0 0.0
    %227 = vmatpush1.msra.mxu0 0.0
    %228 = vmatprep.subr.mxu0 0.0
    %229 = vmatpush1.msra.mxu0 0.0
    %230 = vmatprep.subr.mxu0 0.0
    %231 = vmatpush1.msra.mxu0 0.0
    %232 = vmatprep.subr.mxu0 0.0
    %233 = vmatpush1.msra.mxu0 0.0
    %234 = vmatprep.subr.mxu0 0.0
    %235 = vmatpush1.msra.mxu0 0.0
    %236 = vmatprep.subr.mxu0 0.0
    %237 = vmatpush1.msra.mxu0 0.0
    %238 = vmatprep.subr.mxu0 0.0
    %239 = vmatpush1.msra.mxu0 0.0
    %240 = vmatprep.subr.mxu0 0.0
    %241 = vmatpush1.msra.mxu0 %v209
    %242 = vmatprep.subr.mxu0 0.0
    %243 = vmatpush1.msra.mxu0 %v208
    %244 = vmatprep.subr.mxu0 0.0
    %245 = vmatpush1.msra.mxu0 %v207
    %246 = vmatprep.subr.mxu0 0.0
    %247 = vmatpush1.msra.mxu0 %v206
    %248 = vmatprep.subr.mxu0 0.0
    %249 = vmatpush1.msra.mxu0 %v205
    %250 = vmatprep.subr.mxu0 0.0
    %251 = vmatpush1.msra.mxu0 %v204
    %252 = vmatprep.subr.mxu0 0.0
    %253 = vmatpush1.msra.mxu0 %v203
    %254 = vmatprep.subr.mxu0 0.0
    %255 = vmatpush1.msra.mxu0 %v202
    %256 = vmatprep.subr.mxu0 0.0
    %257 = vmatpush2.msra.mxu0 0.0
    %258 = vmatprep.subr.mxu0 0.0
    %259 = vmatpush2.msra.mxu0 0.0
    %260 = vmatprep.subr.mxu0 0.0
    %261 = vmatpush2.msra.mxu0 0.0
    %262 = vmatprep.subr.mxu0 0.0
    %263 = vmatpush2.msra.mxu0 0.0
    %264 = vmatprep.subr.mxu0 0.0
    %265 = vmatpush2.msra.mxu0 0.0
    %266 = vmatprep.subr.mxu0 0.0
    %267 = vmatpush2.msra.mxu0 0.0
    %268 = vmatprep.subr.mxu0 0.0
    %269 = vmatpush2.msra.mxu0 0.0
    %270 = vmatprep.subr.mxu0 0.0
    %271 = vmatpush2.msra.mxu0 0.0
    %272 = vmatprep.subr.mxu0 0.0
    %273 = vmatpush2.msra.mxu0 0.0
    %274 = vmatprep.subr.mxu0 0.0
    %275 = vmatpush2.msra.mxu0 0.0
    %276 = vmatprep.subr.mxu0 0.0
    %277 = vmatpush2.msra.mxu0 0.0
    %278 = vmatprep.subr.mxu0 0.0
    %279 = vmatpush2.msra.mxu0 0.0
    %280 = vmatprep.subr.mxu0 0.0
    %281 = vmatpush2.msra.mxu0 0.0
    %282 = vmatprep.subr.mxu0 0.0
    %283 = vmatpush2.msra.mxu0 0.0
    %284 = vmatprep.subr.mxu0 0.0
    %285 = vmatpush2.msra.mxu0 0.0
    %286 = vmatprep.subr.mxu0 0.0
    %287 = vmatpush2.msra.mxu0 0.0
    %288 = vmatprep.mubr.f32.mxu0 0.0
    %289 = vmatmul.mubr.f32.gmra.mxu0 %v219
    %v290 = vpop.f32.mrf.mxu0
    %v291 = vadd.f32 %v215, %v290
    %v292 = vpop.f32.mrf.mxu0
    %293 = vmatprep.mubr.f32.mxu0 0.0
    %294 = vmatmul.mubr.f32.gmra.mxu0 %v222
    %v295 = vpop.f32.mrf.mxu0
    %v296 = vadd.f32 %v215, %v295
    %v297 = vpop.f32.mrf.mxu0
    %298 = vdwg.mxu0
    %vm299 = vcmp.gt.f32.partialorder %v291, 0.0
    %vm300 = vcmp.gt.f32.partialorder %v296, 0.0
    %v301 = vmul.f32 %v291, 0.2
    %v302 = vmul.f32 %v296, 0.2
    %v303 = vsel %vm299, %v291, %v301
    %v304 = vsel %vm300, %v296, %v302
    %v305 = vld [vmem:[#allocation8] sm:$0xff]
    %v306 = vld [vmem:[#allocation8 + $0x8] sm:$0xff]
    %v307 = vld [vmem:[#allocation8 + $0x10] sm:$0xff]
    %v308 = vld [vmem:[#allocation8 + $0x18] sm:$0xff]
    %v309 = vld [vmem:[#allocation8 + $0x20] sm:$0xff]
    %v310 = vld [vmem:[#allocation8 + $0x28] sm:$0xff]
    %v311 = vld [vmem:[#allocation8 + $0x30] sm:$0xff]
    %v312 = vld [vmem:[#allocation8 + $0x38] sm:$0xff]
    %v313 = vld [vmem:[%s6] sm:$0x1]
    %v315 = vlaneseq
    %v316 = vshrl.u32 %v315, 7
    %v317 = vsub.s32 0, %v316
    %v318 = vrot.slane %v313, %v317
    %v321 = vsel %vm217, %v303, 0
    %v324 = vsel %vm217, %v304, 0
    %326 = vmatprep.subr.mxu0 0.0
    %327 = vmatpush1.msra.mxu0 0.0
    %328 = vmatprep.subr.mxu0 0.0
    %329 = vmatpush1.msra.mxu0 0.0
    %330 = vmatprep.subr.mxu0 0.0
    %331 = vmatpush1.msra.mxu0 0.0
    %332 = vmatprep.subr.mxu0 0.0
    %333 = vmatpush1.msra.mxu0 0.0
    %334 = vmatprep.subr.mxu0 0.0
    %335 = vmatpush1.msra.mxu0 0.0
    %336 = vmatprep.subr.mxu0 0.0
    %337 = vmatpush1.msra.mxu0 0.0
    %338 = vmatprep.subr.mxu0 0.0
    %339 = vmatpush1.msra.mxu0 0.0
    %340 = vmatprep.subr.mxu0 0.0
    %341 = vmatpush1.msra.mxu0 0.0
    %342 = vmatprep.subr.mxu0 0.0
    %343 = vmatpush1.msra.mxu0 %v312
    %344 = vmatprep.subr.mxu0 0.0
    %345 = vmatpush1.msra.mxu0 %v311
    %346 = vmatprep.subr.mxu0 0.0
    %347 = vmatpush1.msra.mxu0 %v310
    %348 = vmatprep.subr.mxu0 0.0
    %349 = vmatpush1.msra.mxu0 %v309
    %350 = vmatprep.subr.mxu0 0.0
    %351 = vmatpush1.msra.mxu0 %v308
    %352 = vmatprep.subr.mxu0 0.0
    %353 = vmatpush1.msra.mxu0 %v307
    %354 = vmatprep.subr.mxu0 0.0
    %355 = vmatpush1.msra.mxu0 %v306
    %356 = vmatprep.subr.mxu0 0.0
    %357 = vmatpush1.msra.mxu0 %v305
    %358 = vmatprep.subr.mxu0 0.0
    %359 = vmatpush2.msra.mxu0 0.0
    %360 = vmatprep.subr.mxu0 0.0
    %361 = vmatpush2.msra.mxu0 0.0
    %362 = vmatprep.subr.mxu0 0.0
    %363 = vmatpush2.msra.mxu0 0.0
    %364 = vmatprep.subr.mxu0 0.0
    %365 = vmatpush2.msra.mxu0 0.0
    %366 = vmatprep.subr.mxu0 0.0
    %367 = vmatpush2.msra.mxu0 0.0
    %368 = vmatprep.subr.mxu0 0.0
    %369 = vmatpush2.msra.mxu0 0.0
    %370 = vmatprep.subr.mxu0 0.0
    %371 = vmatpush2.msra.mxu0 0.0
    %372 = vmatprep.subr.mxu0 0.0
    %373 = vmatpush2.msra.mxu0 0.0
    %374 = vmatprep.subr.mxu0 0.0
    %375 = vmatpush2.msra.mxu0 0.0
    %376 = vmatprep.subr.mxu0 0.0
    %377 = vmatpush2.msra.mxu0 0.0
    %378 = vmatprep.subr.mxu0 0.0
    %379 = vmatpush2.msra.mxu0 0.0
    %380 = vmatprep.subr.mxu0 0.0
    %381 = vmatpush2.msra.mxu0 0.0
    %382 = vmatprep.subr.mxu0 0.0
    %383 = vmatpush2.msra.mxu0 0.0
    %384 = vmatprep.subr.mxu0 0.0
    %385 = vmatpush2.msra.mxu0 0.0
    %386 = vmatprep.subr.mxu0 0.0
    %387 = vmatpush2.msra.mxu0 0.0
    %388 = vmatprep.subr.mxu0 0.0
    %389 = vmatpush2.msra.mxu0 0.0
    %390 = vmatprep.mubr.f32.mxu0 0.0
    %391 = vmatmul.mubr.f32.gmra.mxu0 %v321
    %v392 = vpop.f32.mrf.mxu0
    %v393 = vadd.f32 %v318, %v392
    %v394 = vpop.f32.mrf.mxu0
    %395 = vmatprep.mubr.f32.mxu0 0.0
    %396 = vmatmul.mubr.f32.gmra.mxu0 %v324
    %v397 = vpop.f32.mrf.mxu0
    %v398 = vadd.f32 %v318, %v397
    %v399 = vpop.f32.mrf.mxu0
    %400 = vdwg.mxu0
    %vm401 = vcmp.gt.f32.partialorder %v393, 0.0
    %vm402 = vcmp.gt.f32.partialorder %v398, 0.0
    %v403 = vmul.f32 %v393, 0.2
    %v404 = vmul.f32 %v398, 0.2
    %v405 = vsel %vm401, %v393, %v403
    %v406 = vsel %vm402, %v398, %v404
    %v407 = vld [vmem:[#allocation10] sm:$0xff]
    %v408 = vld [vmem:[#allocation10 + $0x8] sm:$0xff]
    %v409 = vld [vmem:[#allocation10 + $0x10] sm:$0xff]
    %v410 = vld [vmem:[#allocation10 + $0x18] sm:$0xff]
    %v411 = vld [vmem:[#allocation10 + $0x20] sm:$0xff]
    %v412 = vld [vmem:[#allocation10 + $0x28] sm:$0xff]
    %v413 = vld [vmem:[#allocation10 + $0x30] sm:$0xff]
    %v414 = vld [vmem:[#allocation10 + $0x38] sm:$0xff]
    %v415 = vld [vmem:[%s8] sm:$0x1]
    %v417 = vlaneseq
    %v418 = vshrl.u32 %v417, 7
    %v419 = vsub.s32 0, %v418
    %v420 = vrot.slane %v415, %v419
    %v423 = vsel %vm217, %v405, 0
    %v426 = vsel %vm217, %v406, 0
    %428 = vmatprep.subr.mxu0 0.0
    %429 = vmatpush1.msra.mxu0 0.0
    %430 = vmatprep.subr.mxu0 0.0
    %431 = vmatpush1.msra.mxu0 0.0
    %432 = vmatprep.subr.mxu0 0.0
    %433 = vmatpush1.msra.mxu0 0.0
    %434 = vmatprep.subr.mxu0 0.0
    %435 = vmatpush1.msra.mxu0 0.0
    %436 = vmatprep.subr.mxu0 0.0
    %437 = vmatpush1.msra.mxu0 0.0
    %438 = vmatprep.subr.mxu0 0.0
    %439 = vmatpush1.msra.mxu0 0.0
    %440 = vmatprep.subr.mxu0 0.0
    %441 = vmatpush1.msra.mxu0 0.0
    %442 = vmatprep.subr.mxu0 0.0
    %443 = vmatpush1.msra.mxu0 0.0
    %444 = vmatprep.subr.mxu0 0.0
    %445 = vmatpush1.msra.mxu0 %v414
    %446 = vmatprep.subr.mxu0 0.0
    %447 = vmatpush1.msra.mxu0 %v413
    %448 = vmatprep.subr.mxu0 0.0
    %449 = vmatpush1.msra.mxu0 %v412
    %450 = vmatprep.subr.mxu0 0.0
    %451 = vmatpush1.msra.mxu0 %v411
    %452 = vmatprep.subr.mxu0 0.0
    %453 = vmatpush1.msra.mxu0 %v410
    %454 = vmatprep.subr.mxu0 0.0
    %455 = vmatpush1.msra.mxu0 %v409
    %456 = vmatprep.subr.mxu0 0.0
    %457 = vmatpush1.msra.mxu0 %v408
    %458 = vmatprep.subr.mxu0 0.0
    %459 = vmatpush1.msra.mxu0 %v407
    %460 = vmatprep.subr.mxu0 0.0
    %461 = vmatpush2.msra.mxu0 0.0
    %462 = vmatprep.subr.mxu0 0.0
    %463 = vmatpush2.msra.mxu0 0.0
    %464 = vmatprep.subr.mxu0 0.0
    %465 = vmatpush2.msra.mxu0 0.0
    %466 = vmatprep.subr.mxu0 0.0
    %467 = vmatpush2.msra.mxu0 0.0
    %468 = vmatprep.subr.mxu0 0.0
    %469 = vmatpush2.msra.mxu0 0.0
    %470 = vmatprep.subr.mxu0 0.0
    %471 = vmatpush2.msra.mxu0 0.0
    %472 = vmatprep.subr.mxu0 0.0
    %473 = vmatpush2.msra.mxu0 0.0
    %474 = vmatprep.subr.mxu0 0.0
    %475 = vmatpush2.msra.mxu0 0.0
    %476 = vmatprep.subr.mxu0 0.0
    %477 = vmatpush2.msra.mxu0 0.0
    %478 = vmatprep.subr.mxu0 0.0
    %479 = vmatpush2.msra.mxu0 0.0
    %480 = vmatprep.subr.mxu0 0.0
    %481 = vmatpush2.msra.mxu0 0.0
    %482 = vmatprep.subr.mxu0 0.0
    %483 = vmatpush2.msra.mxu0 0.0
    %484 = vmatprep.subr.mxu0 0.0
    %485 = vmatpush2.msra.mxu0 0.0
    %486 = vmatprep.subr.mxu0 0.0
    %487 = vmatpush2.msra.mxu0 0.0
    %488 = vmatprep.subr.mxu0 0.0
    %489 = vmatpush2.msra.mxu0 0.0
    %490 = vmatprep.subr.mxu0 0.0
    %491 = vmatpush2.msra.mxu0 0.0
    %492 = vmatprep.mubr.f32.mxu0 0.0
    %493 = vmatmul.mubr.f32.gmra.mxu0 %v423
    %v494 = vpop.f32.mrf.mxu0
    %v495 = vadd.f32 %v420, %v494
    %v496 = vpop.f32.mrf.mxu0
    %497 = vmatprep.mubr.f32.mxu0 0.0
    %498 = vmatmul.mubr.f32.gmra.mxu0 %v426
    %v499 = vpop.f32.mrf.mxu0
    %v500 = vadd.f32 %v420, %v499
    %v501 = vpop.f32.mrf.mxu0
    %502 = vdwg.mxu0
    %503 = vst.msk [vmem:[#allocation11] sm:$0xff] %vm217, %v495
    %504 = vst.msk [vmem:[#allocation11 + $0x8] sm:$0xff] %vm217, %v500
    // Predicated region
    $region58: #{tpu_custom_call.1} parent=1 // pred_check
      _
    $region59: #{tpu_custom_call.1} parent=1 // pred_check_branch
      %506 = sbr.rel (0) target = $region61
    $region60: #{tpu_custom_call.1} parent=1 // pred_region
      %s508 = ssub.s32 256, 256
      %509 = vsyncadd [#allocation4], %s508
      %s510 = sshll.u32 [#allocation11], 4
      %s511 = int_to_ptr.vmem [resolvable:$true] %s510
      %516 = dma.vmem_to_hbm [thread:$0]  %s511, 256, %s9, [#allocation4], 128, 128, 8
    $region61: #{tpu_custom_call.1} parent=1 // pred_fallthru
      _
    // Predicated region
    $region62: #{tpu_custom_call.1} parent=1 // pred_check
      _
    $region63: #{tpu_custom_call.1} parent=1 // pred_check_branch
      %518 = sbr.rel (0) target = $region65
    $region64: #{tpu_custom_call.1} parent=1 // pred_region
      %519 = dma.done [#allocation4], 256
    $region65: #{tpu_custom_call.1} parent=1 // pred_fallthru
      _
    %520 = vsyncpa [#allocation3], 1
    %521 = vsyncpa [#allocation6], 1
    %522 = vsyncpa [#allocation9], 1
    %523 = vsyncpa [#allocation4], 1

</llo_original>
